<compile_context>
chip_gen: v6e
topology: v6e:2x2x1
jax: 0.10.0
libtpu: 0.0.40
codegen_flags: <defaults>
</compile_context>

<pallas_src>
import functools

import jax
import jax.numpy as jnp
from jax import lax
from jax.experimental import pallas as pl
from jax.experimental.pallas import tpu as pltpu

HID_SIZE = 10
STATE_SIZE = 16 * 3          # 48
NUM_HEADS = 3                # alpha, beta, value
AUG = HID_SIZE + 1           # hidden width + constant-1 column (bias fold)


def _softplus(x):
    # Numerically-stable softplus, identical to torch.nn.Softplus(beta=1).
    return jnp.maximum(x, 0.0) + jnp.log1p(jnp.exp(-jnp.abs(x)))


def _ceil_to(n, m):
    return -(-n // m) * m


def actor_kernel(x_ref, w1a_ref, b1a_ref, whb_ref, out_ref):
    # x_ref:   [TB, 48]   (f32 or bf16)   streamed per grid step
    # w1a_ref: [48, 11]   (same dtype as x) resident; last column is zeros
    # b1a_ref: [1, 11]    f32 resident;     last entry is 1.0
    # whb_ref: [3, 11]    f32 resident;     [:, :10] = Wh^T, [:, 10] = bh
    # out_ref: [3, TB]    f32 (row0=alpha, row1=beta, row2=value), lane-dense
    base = jnp.dot(x_ref[...], w1a_ref[...],
                   preferred_element_type=jnp.float32)                 # [TB, 11]
    base = jnp.maximum(base + b1a_ref[...], 0.0)                       # ReLU; col 10 == 1.0

    # zt[h, n] = sum_k whb[h, k] * base[n, k]  (includes bh via the 1-column)
    # Transposed-RHS contraction -> lane-dense [3, TB] with no explicit transpose.
    zt = lax.dot_general(whb_ref[...], base, (((1,), (1,)), ((), ())),
                         preferred_element_type=jnp.float32)           # [3, TB]

    # One full (unmasked) store: softplus on rows 0-1, sigmoid on row 2.
    row = lax.broadcasted_iota(jnp.int32, zt.shape, 0)
    out_ref[...] = jnp.where(row < NUM_HEADS - 1, _softplus(zt),
                             jax.nn.sigmoid(zt))


@functools.partial(jax.jit, static_argnames=("block_batch",))
def actor_forward(x, packed_params, *, block_batch=8192):
    """x: [B, STATE_SIZE] (f32 or bf16).  Returns (alpha, beta, value), each [B,1] f32.

    The kernel streams x in its incoming dtype; pass bf16 x only if it is
    already produced/stored in bf16 (casting here would add an extra HBM pass
    over the dominant stream).  For tiny B the pallas_call launch overhead
    dwarfs the ~1 KFLOP of work; batch many actor states together in that
    regime.
    """
    w1a, b1a, whb = packed_params
    if w1a.dtype != x.dtype:
        w1a = w1a.astype(x.dtype)          # 48x11 — negligible

    B = x.shape[0]
    itemsize = jnp.dtype(x.dtype).itemsize

    # ---- batch tile: big enough to amortize per-step overhead, multiple of
    # 128 so the [3, tb] output block stays lane-dense and the x block's
    # sublane dim is a multiple of 8.
    rounded = _ceil_to(B, 128)
    tb = min(block_batch, rounded)
    # VMEM safety cap (~5 lane-padded tb-sized buffers under ~40 MiB).
    max_tb = max(128, ((40 << 20) // (5 * 128 * itemsize)) // 128 * 128)
    tb = min(tb, max_tb)
    # Keep >= 2 grid steps when the batch allows, so v7x can shard the batch
    # grid across its 2 TensorCores (no-op on single-TC v5e/v6e).
    if rounded >= 256 and -(-B // tb) < 2:
        tb = min(tb, _ceil_to(rounded // 2, 128))
    grid = (-(-B // tb),)

    # ---- explicit VMEM budget: x block is lane-padded 48->128; double-buffered.
    x_block_bytes = tb * 128 * itemsize
    vmem_bytes = (4 * x_block_bytes            # 2 x-buffers + headroom
                  + 4 * tb * 32                # [3, tb] output buffers
                  + tb * 128 * 4               # [tb, 11] f32 intermediate (padded)
                  + (4 << 20))                 # internal scratch / slack
    vmem_limit = int(min(max(vmem_bytes, 32 << 20), 48 << 20))

    cost = pl.CostEstimate(
        flops=2 * B * (STATE_SIZE * AUG + AUG * NUM_HEADS),
        transcendentals=2 * NUM_HEADS * B,
        bytes_accessed=(B * STATE_SIZE * itemsize          # x stream
                        + NUM_HEADS * B * 4                # fused output
                        + STATE_SIZE * AUG * itemsize      # W1 (augmented)
                        + (AUG + NUM_HEADS * AUG) * 4),    # biases / head weights
    )

    out = pl.pallas_call(
        actor_kernel,
        out_shape=jax.ShapeDtypeStruct((NUM_HEADS, B), jnp.float32),
        grid_spec=pltpu.PrefetchScalarGridSpec(
            num_scalar_prefetch=0,
            grid=grid,
            in_specs=[
                pl.BlockSpec((tb, STATE_SIZE), lambda i: (i, 0)),        # x (streamed)
                pl.BlockSpec((STATE_SIZE, AUG), lambda i: (0, 0)),       # W1|0 (resident)
                pl.BlockSpec((1, AUG), lambda i: (0, 0)),                # b1|1
                pl.BlockSpec((NUM_HEADS, AUG), lambda i: (0, 0)),        # Wh^T|bh
            ],
            out_specs=pl.BlockSpec((NUM_HEADS, tb), lambda i: (0, i)),
        ),
        compiler_params=pltpu.CompilerParams(
            dimension_semantics=("parallel",),   # shards batch over 2 TCs on v7x
            vmem_limit_bytes=vmem_limit),
        cost_estimate=cost,
    )(x, w1a, b1a, whb)

    alpha = out[0, :, None]
    beta = out[1, :, None]
    value = out[2, :, None]
    return alpha, beta, value


def init_params(key):
    """Deterministic synthetic init (uniform(-1/sqrt(fan_in), 1/sqrt(fan_in)),
    same scheme nn.Linear uses).  Weights stored as [in, out]."""
    k1, k2, k3, k4 = jax.random.split(key, 4)

    def linear_init(kw, kb, fan_in, fan_out):
        bound = 1.0 / jnp.sqrt(fan_in)
        w = jax.random.uniform(kw, (fan_in, fan_out), jnp.float32, -bound, bound)
        b = jax.random.uniform(kb, (1, fan_out), jnp.float32, -bound, bound)
        return w, b

    w1, b1 = linear_init(k1, k2, STATE_SIZE, HID_SIZE)    # base layer
    # Three head layers (alpha, beta, value), each Linear(HID_SIZE, 1),
    # fused into one [HID_SIZE, 3] weight / [1, 3] bias.
    wh, bh = linear_init(k3, k4, HID_SIZE, NUM_HEADS)
    return w1, b1, wh, bh


def pack_params(params):
    """Fold biases into the matmuls:
       w1a [48,11] = [W1 | 0], b1a [1,11] = [b1 | 1]  -> base_aug[:,10] == 1.0
       whb [3,11]  = [Wh^T | bh^T]                    -> zt = whb . base_aug^T adds bh
    """
    w1, b1, wh, bh = params
    w1a = jnp.concatenate([w1, jnp.zeros((STATE_SIZE, 1), w1.dtype)], axis=1)
    b1a = jnp.concatenate([b1, jnp.ones((1, 1), b1.dtype)], axis=1)
    whb = jnp.concatenate([wh.T, bh.T], axis=1)
    return w1a, b1a, whb


def actor_ref(x, params):
    """Pure-JAX reference for correctness checking."""
    w1, b1, wh, bh = params
    base = jnp.maximum(x.astype(jnp.float32) @ w1 + b1, 0.0)
    z = base @ wh + bh
    return (jax.nn.softplus(z[:, 0:1]),
            jax.nn.softplus(z[:, 1:2]),
            jax.nn.sigmoid(z[:, 2:3]))


if __name__ == "__main__":
    key = jax.random.PRNGKey(0)
    kx, kp, kx2 = jax.random.split(key, 3)

    params = init_params(kp)
    packed = pack_params(params)

    # --- small-shape correctness check (f32 path, matches module defaults) ---
    B = 2
    x = jax.random.normal(kx, (B, STATE_SIZE), jnp.float32)
    alpha, beta, value = actor_forward(x, packed)
    jax.block_until_ready((alpha, beta, value))

    a_ref, b_ref, v_ref = actor_ref(x, params)
    assert alpha.shape == (B, 1) and beta.shape == (B, 1) and value.shape == (B, 1)
    assert jnp.allclose(alpha, a_ref, atol=1e-5), "alpha mismatch"
    assert jnp.allclose(beta, b_ref, atol=1e-5), "beta mismatch"
    assert jnp.allclose(value, v_ref, atol=1e-5), "value mismatch"

    # --- larger batch exercising the pipelined multi-step grid (f32) ---
    B2 = 4096
    x2 = jax.random.normal(kx2, (B2, STATE_SIZE), jnp.float32)
    a2, b2, v2 = actor_forward(x2, packed)
    jax.block_until_ready((a2, b2, v2))
    ar2, br2, vr2 = actor_ref(x2, params)
    assert jnp.allclose(a2, ar2, atol=1e-5), "alpha (large) mismatch"
    assert jnp.allclose(b2, br2, atol=1e-5), "beta (large) mismatch"
    assert jnp.allclose(v2, vr2, atol=1e-5), "value (large) mismatch"

    # --- bf16 streaming path: only valid when x is ALREADY bf16 upstream ---
    x2_bf16 = x2.astype(jnp.bfloat16)   # emulates a producer that emits bf16
    a3, b3, v3 = actor_forward(x2_bf16, packed)
    jax.block_until_ready((a3, b3, v3))
    ar3, br3, vr3 = actor_ref(x2_bf16, params)
    assert jnp.allclose(a3, ar3, atol=3e-2, rtol=3e-2), "alpha (bf16) mismatch"
    assert jnp.allclose(b3, br3, atol=3e-2, rtol=3e-2), "beta (bf16) mismatch"
    assert jnp.allclose(v3, vr3, atol=3e-2, rtol=3e-2), "value (bf16) mismatch"

    print("KERNEL_OK")
</pallas_src>

<mosaic_0001>
module attributes {stable_mosaic.version = 11 : i64} {
  func.func @actor_kernel(%arg0: i32, %arg1: memref<128x48xf32, #tpu.memory_space<vmem>>, %arg2: memref<48x11xf32, #tpu.memory_space<vmem>>, %arg3: memref<1x11xf32, #tpu.memory_space<vmem>>, %arg4: memref<3x11xf32, #tpu.memory_space<vmem>>, %arg5: memref<3x128xf32, #tpu.memory_space<vmem>>) attributes {dimension_semantics = [#tpu.dimension_semantics<parallel>], iteration_bounds = array<i64: 1>, scalar_prefetch = 0 : i64, scratch_operands = 0 : i64, tpu.core_type = #tpu.core_type<tc>, window_params = [{transform_indices = @transform_0, window_bounds = array<i64: 128, 48>}, {pipeline_mode = #tpu.pipeline_mode<synchronous>, transform_indices = @transform_1, window_bounds = array<i64: 48, 11>}, {pipeline_mode = #tpu.pipeline_mode<synchronous>, transform_indices = @transform_2, window_bounds = array<i64: 1, 11>}, {pipeline_mode = #tpu.pipeline_mode<synchronous>, transform_indices = @transform_3, window_bounds = array<i64: 3, 11>}, {transform_indices = @transform_4, window_bounds = array<i64: 3, 128>}]} {
    %c0 = arith.constant 0 : index
    %c0_0 = arith.constant 0 : index
    %0 = vector.load %arg1[%c0, %c0_0] : memref<128x48xf32, #tpu.memory_space<vmem>>, vector<128x48xf32>
    %c0_1 = arith.constant 0 : index
    %c0_2 = arith.constant 0 : index
    %1 = vector.load %arg2[%c0_1, %c0_2] : memref<48x11xf32, #tpu.memory_space<vmem>>, vector<48x11xf32>
    %cst = arith.constant dense<0.000000e+00> : vector<128x11xf32>
    %2 = tpu.matmul %0, %1, %cst {dimension_numbers = #tpu.dot_dimension_numbers<[1], [0], [0], [1], [0, 0, 1, 1], [], []>} : vector<128x48xf32>, vector<48x11xf32>, vector<128x11xf32> -> vector<128x11xf32>
    %c0_3 = arith.constant 0 : index
    %c0_4 = arith.constant 0 : index
    %3 = vector.load %arg3[%c0_3, %c0_4] : memref<1x11xf32, #tpu.memory_space<vmem>>, vector<1x11xf32>
    %4 = vector.broadcast %3 : vector<1x11xf32> to vector<128x11xf32>
    %5 = arith.addf %2, %4 : vector<128x11xf32>
    %cst_5 = arith.constant 0.000000e+00 : f32
    %6 = vector.broadcast %cst_5 : f32 to vector<128x11xf32>
    %7 = arith.maximumf %5, %6 : vector<128x11xf32>
    %c0_6 = arith.constant 0 : index
    %c0_7 = arith.constant 0 : index
    %8 = vector.load %arg4[%c0_6, %c0_7] : memref<3x11xf32, #tpu.memory_space<vmem>>, vector<3x11xf32>
    %cst_8 = arith.constant dense<0.000000e+00> : vector<3x128xf32>
    %9 = tpu.matmul %8, %7, %cst_8 {dimension_numbers = #tpu.dot_dimension_numbers<[1], [1], [0], [0], [0, 0, 1, 0], [], []>} : vector<3x11xf32>, vector<128x11xf32>, vector<3x128xf32> -> vector<3x128xf32>
    %10 = tpu.iota {dimensions = array<i32: 0>} : vector<3x128xi32>
    %c2_i32 = arith.constant 2 : i32
    %11 = vector.broadcast %c2_i32 : i32 to vector<3x128xi32>
    %12 = arith.cmpi slt, %10, %11 : vector<3x128xi32>
    %cst_9 = arith.constant 0.000000e+00 : f32
    %13 = vector.broadcast %cst_9 : f32 to vector<3x128xf32>
    %14 = arith.maximumf %9, %13 : vector<3x128xf32>
    %15 = math.absf %9 : vector<3x128xf32>
    %cst_10 = arith.constant 0.000000e+00 : f32
    %16 = vector.broadcast %cst_10 : f32 to vector<3x128xf32>
    %17 = arith.subf %16, %15 : vector<3x128xf32>
    %18 = math.exp %17 : vector<3x128xf32>
    %19 = math.log1p %18 : vector<3x128xf32>
    %20 = arith.addf %14, %19 : vector<3x128xf32>
    %21 = arith.negf %9 : vector<3x128xf32>
    %22 = math.exp %21 : vector<3x128xf32>
    %cst_11 = arith.constant 1.000000e+00 : f32
    %23 = vector.broadcast %cst_11 : f32 to vector<3x128xf32>
    %24 = arith.addf %23, %22 : vector<3x128xf32>
    %25 = arith.divf %23, %24 : vector<3x128xf32>
    %26 = arith.select %12, %20, %25 : vector<3x128xi1>, vector<3x128xf32>
    %c0_12 = arith.constant 0 : index
    %c0_13 = arith.constant 0 : index
    %27 = vector.load %arg5[%c0_12, %c0_13] : memref<3x128xf32, #tpu.memory_space<vmem>>, vector<3x128xf32>
    tpu.vector_store %arg5[%c0_12, %c0_13], %26 {strides = array<i32>} : memref<3x128xf32, #tpu.memory_space<vmem>>, vector<3x128xf32>,
    return
  }
  func.func @transform_0(%arg0: i32) -> (i32, i32) {
    %c0_i32 = arith.constant 0 : i32
    %c0_i32_0 = arith.constant 0 : i32
    return %arg0, %c0_i32 : i32, i32
  }
  func.func @transform_1(%arg0: i32) -> (i32, i32) {
    %c0_i32 = arith.constant 0 : i32
    %c0_i32_0 = arith.constant 0 : i32
    %c0_i32_1 = arith.constant 0 : i32
    return %c0_i32, %c0_i32_0 : i32, i32
  }
  func.func @transform_2(%arg0: i32) -> (i32, i32) {
    %c0_i32 = arith.constant 0 : i32
    %c0_i32_0 = arith.constant 0 : i32
    %c0_i32_1 = arith.constant 0 : i32
    return %c0_i32, %c0_i32_0 : i32, i32
  }
  func.func @transform_3(%arg0: i32) -> (i32, i32) {
    %c0_i32 = arith.constant 0 : i32
    %c0_i32_0 = arith.constant 0 : i32
    %c0_i32_1 = arith.constant 0 : i32
    return %c0_i32, %c0_i32_0 : i32, i32
  }
  func.func @transform_4(%arg0: i32) -> (i32, i32) {
    %c0_i32 = arith.constant 0 : i32
    %c0_i32_0 = arith.constant 0 : i32
    return %c0_i32, %arg0 : i32, i32
  }
}

</mosaic_0001>

<llo_original>
// kernel: actor_forward.1
$region0: #{actor_forward.1}
  #allocation0 [shape = 'u32[]', space=smem, size = 0x4, offset = 0x4, fixed_abs, tag = 'smem constant byte address 0x4 - core index']
  #allocation1 [shape = 'u32[144,128]{1,0:T(1,128)}', space=vmem, size = 0x12000, scoped, tag = 'internal scratch']
  %s0 = inlined_call_operand.vmem [shape: f32[2,48], index: 0, kind: input, shape index: {}]
  %s1 = inlined_call_operand.vmem [shape: f32[48,11], index: 1, kind: input, shape index: {}]
  %s2 = inlined_call_operand.vmem [shape: f32[1,11], index: 2, kind: input, shape index: {}]
  %s3 = inlined_call_operand.vmem [shape: f32[3,11], index: 3, kind: input, shape index: {}]
  %s4 = inlined_call_operand.vmem [shape: f32[3,2], index: 4, kind: output, shape index: {}]
  %s5 = sld [smem:[#allocation0]]
  $region26: #{actor_forward.1} parent=0
    _
  %s7 = ssub.s32 1, %s5
  %s8 = scalar_select 0, %s7, %s5
  // Predicated region
  $region2: #{actor_forward.1} parent=0 // pred_check
    _
  $region3: #{actor_forward.1} parent=0 // pred_check_branch
    %10 = sbr.rel (0) target = $region5
  $region4: #{actor_forward.1} parent=0 // pred_region
    _
  $region5: #{actor_forward.1} parent=0 // pred_fallthru
    _
  // Predicated region
  $region6: #{actor_forward.1} parent=0 // pred_check
    _
  $region7: #{actor_forward.1} parent=0 // pred_check_branch
    %12 = sbr.rel (0) target = $region9
  $region8: #{actor_forward.1} parent=0 // pred_region
    _
  $region9: #{actor_forward.1} parent=0 // pred_fallthru
    _
  // Predicated region
  $region10: #{actor_forward.1} parent=0 // pred_check
    _
  $region11: #{actor_forward.1} parent=0 // pred_check_branch
    %14 = sbr.rel (0) target = $region13
  $region12: #{actor_forward.1} parent=0 // pred_region
    _
  $region13: #{actor_forward.1} parent=0 // pred_fallthru
    _
  // Predicated region
  $region14: #{actor_forward.1} parent=0 // pred_check
    _
  $region15: #{actor_forward.1} parent=0 // pred_check_branch
    %16 = sbr.rel (0) target = $region17
  $region16: #{actor_forward.1} parent=0 // pred_region
    _
  $region17: #{actor_forward.1} parent=0 // pred_fallthru
    _
  %v17 = vld [vmem:[%s0] sm:$0xff]
  %v18 = vld [vmem:[%s0 + $0x8] sm:$0xff]
  %v19 = vld [vmem:[%s0 + $0x10] sm:$0xff]
  %v20 = vld [vmem:[%s0 + $0x18] sm:$0xff]
  %v21 = vld [vmem:[%s0 + $0x20] sm:$0xff]
  %v22 = vld [vmem:[%s0 + $0x28] sm:$0xff]
  %v23 = vld [vmem:[%s0 + $0x30] sm:$0xff]
  %v24 = vld [vmem:[%s0 + $0x38] sm:$0xff]
  %v25 = vld [vmem:[%s0 + $0x40] sm:$0xff]
  %v26 = vld [vmem:[%s0 + $0x48] sm:$0xff]
  %v27 = vld [vmem:[%s0 + $0x50] sm:$0xff]
  %v28 = vld [vmem:[%s0 + $0x58] sm:$0xff]
  %v29 = vld [vmem:[%s0 + $0x60] sm:$0xff]
  %v30 = vld [vmem:[%s0 + $0x68] sm:$0xff]
  %v31 = vld [vmem:[%s0 + $0x70] sm:$0xff]
  %v32 = vld [vmem:[%s0 + $0x78] sm:$0xff]
  %v33 = vld [vmem:[%s1] sm:$0xff]
  %v34 = vld [vmem:[%s1 + $0x8] sm:$0xff]
  %v35 = vld [vmem:[%s1 + $0x10] sm:$0xff]
  %v36 = vld [vmem:[%s1 + $0x18] sm:$0xff]
  %v37 = vld [vmem:[%s1 + $0x20] sm:$0xff]
  %v38 = vld [vmem:[%s1 + $0x28] sm:$0xff]
  %v39 = vld [vmem:[%s2] sm:$0x1]
  %v41 = vlaneseq
  %v42 = vshrl.u32 %v41, 7
  %v43 = vsub.s32 0, %v42
  %v44 = vrot.slane %v39, %v43
  %vm46 = vcmask 392192
  %v48 = vsel %vm46, %v17, 0
  %v51 = vsel %vm46, %v18, 0
  %v54 = vsel %vm46, %v19, 0
  %v57 = vsel %vm46, %v20, 0
  %v60 = vsel %vm46, %v21, 0
  %v63 = vsel %vm46, %v22, 0
  %v66 = vsel %vm46, %v23, 0
  %v69 = vsel %vm46, %v24, 0
  %v72 = vsel %vm46, %v25, 0
  %v75 = vsel %vm46, %v26, 0
  %v78 = vsel %vm46, %v27, 0
  %v81 = vsel %vm46, %v28, 0
  %v84 = vsel %vm46, %v29, 0
  %v87 = vsel %vm46, %v30, 0
  %v90 = vsel %vm46, %v31, 0
  %v93 = vsel %vm46, %v32, 0
  %95 = vmatprep.subr.mxu0 0.0
  %96 = vmatpush1.msra.mxu0 0.0
  %97 = vmatprep.subr.mxu0 0.0
  %98 = vmatpush1.msra.mxu0 0.0
  %99 = vmatprep.subr.mxu0 0.0
  %100 = vmatpush1.msra.mxu0 0.0
  %101 = vmatprep.subr.mxu0 0.0
  %102 = vmatpush1.msra.mxu0 0.0
  %103 = vmatprep.subr.mxu0 0.0
  %104 = vmatpush1.msra.mxu0 0.0
  %105 = vmatprep.subr.mxu0 0.0
  %106 = vmatpush1.msra.mxu0 0.0
  %107 = vmatprep.subr.mxu0 0.0
  %108 = vmatpush1.msra.mxu0 0.0
  %109 = vmatprep.subr.mxu0 0.0
  %110 = vmatpush1.msra.mxu0 0.0
  %111 = vmatprep.subr.mxu0 0.0
  %112 = vmatpush1.msra.mxu0 0.0
  %113 = vmatprep.subr.mxu0 0.0
  %114 = vmatpush1.msra.mxu0 0.0
  %115 = vmatprep.subr.mxu0 0.0
  %116 = vmatpush1.msra.mxu0 %v38
  %117 = vmatprep.subr.mxu0 0.0
  %118 = vmatpush1.msra.mxu0 %v37
  %119 = vmatprep.subr.mxu0 0.0
  %120 = vmatpush1.msra.mxu0 %v36
  %121 = vmatprep.subr.mxu0 0.0
  %122 = vmatpush1.msra.mxu0 %v35
  %123 = vmatprep.subr.mxu0 0.0
  %124 = vmatpush1.msra.mxu0 %v34
  %125 = vmatprep.subr.mxu0 0.0
  %126 = vmatpush1.msra.mxu0 %v33
  %127 = vmatprep.subr.mxu0 0.0
  %128 = vmatpush2.msra.mxu0 0.0
  %129 = vmatprep.subr.mxu0 0.0
  %130 = vmatpush2.msra.mxu0 0.0
  %131 = vmatprep.subr.mxu0 0.0
  %132 = vmatpush2.msra.mxu0 0.0
  %133 = vmatprep.subr.mxu0 0.0
  %134 = vmatpush2.msra.mxu0 0.0
  %135 = vmatprep.subr.mxu0 0.0
  %136 = vmatpush2.msra.mxu0 0.0
  %137 = vmatprep.subr.mxu0 0.0
  %138 = vmatpush2.msra.mxu0 0.0
  %139 = vmatprep.subr.mxu0 0.0
  %140 = vmatpush2.msra.mxu0 0.0
  %141 = vmatprep.subr.mxu0 0.0
  %142 = vmatpush2.msra.mxu0 0.0
  %143 = vmatprep.subr.mxu0 0.0
  %144 = vmatpush2.msra.mxu0 0.0
  %145 = vmatprep.subr.mxu0 0.0
  %146 = vmatpush2.msra.mxu0 0.0
  %147 = vmatprep.subr.mxu0 0.0
  %148 = vmatpush2.msra.mxu0 0.0
  %149 = vmatprep.subr.mxu0 0.0
  %150 = vmatpush2.msra.mxu0 0.0
  %151 = vmatprep.subr.mxu0 0.0
  %152 = vmatpush2.msra.mxu0 0.0
  %153 = vmatprep.subr.mxu0 0.0
  %154 = vmatpush2.msra.mxu0 0.0
  %155 = vmatprep.subr.mxu0 0.0
  %156 = vmatpush2.msra.mxu0 0.0
  %157 = vmatprep.subr.mxu0 0.0
  %158 = vmatpush2.msra.mxu0 0.0
  %159 = vmatprep.mubr.f32.mxu0 0.0
  %160 = vmatmul.mubr.f32.gmra.mxu0 %v48
  %v161 = vpop.f32.mrf.mxu0
  %v162 = vadd.f32 %v44, %v161
  %v163 = vpop.f32.mrf.mxu0
  %164 = vmatprep.mubr.f32.mxu0 0.0
  %165 = vmatmul.mubr.f32.gmra.mxu0 %v51
  %v166 = vpop.f32.mrf.mxu0
  %v167 = vadd.f32 %v44, %v166
  %v168 = vpop.f32.mrf.mxu0
  %169 = vmatprep.mubr.f32.mxu0 0.0
  %170 = vmatmul.mubr.f32.gmra.mxu0 %v54
  %v171 = vpop.f32.mrf.mxu0
  %v172 = vadd.f32 %v44, %v171
  %v173 = vpop.f32.mrf.mxu0
  %174 = vmatprep.mubr.f32.mxu0 0.0
  %175 = vmatmul.mubr.f32.gmra.mxu0 %v57
  %v176 = vpop.f32.mrf.mxu0
  %v177 = vadd.f32 %v44, %v176
  %v178 = vpop.f32.mrf.mxu0
  %179 = vmatprep.mubr.f32.mxu0 0.0
  %180 = vmatmul.mubr.f32.gmra.mxu0 %v60
  %v181 = vpop.f32.mrf.mxu0
  %v182 = vadd.f32 %v44, %v181
  %v183 = vpop.f32.mrf.mxu0
  %184 = vmatprep.mubr.f32.mxu0 0.0
  %185 = vmatmul.mubr.f32.gmra.mxu0 %v63
  %v186 = vpop.f32.mrf.mxu0
  %v187 = vadd.f32 %v44, %v186
  %v188 = vpop.f32.mrf.mxu0
  %189 = vmatprep.mubr.f32.mxu0 0.0
  %190 = vmatmul.mubr.f32.gmra.mxu0 %v66
  %v191 = vpop.f32.mrf.mxu0
  %v192 = vadd.f32 %v44, %v191
  %v193 = vpop.f32.mrf.mxu0
  %194 = vmatprep.mubr.f32.mxu0 0.0
  %195 = vmatmul.mubr.f32.gmra.mxu0 %v69
  %v196 = vpop.f32.mrf.mxu0
  %v197 = vadd.f32 %v44, %v196
  %v198 = vpop.f32.mrf.mxu0
  %199 = vmatprep.mubr.f32.mxu0 0.0
  %200 = vmatmul.mubr.f32.gmra.mxu0 %v72
  %v201 = vpop.f32.mrf.mxu0
  %v202 = vadd.f32 %v44, %v201
  %v203 = vpop.f32.mrf.mxu0
  %204 = vmatprep.mubr.f32.mxu0 0.0
  %205 = vmatmul.mubr.f32.gmra.mxu0 %v75
  %v206 = vpop.f32.mrf.mxu0
  %v207 = vadd.f32 %v44, %v206
  %v208 = vpop.f32.mrf.mxu0
  %209 = vmatprep.mubr.f32.mxu0 0.0
  %210 = vmatmul.mubr.f32.gmra.mxu0 %v78
  %v211 = vpop.f32.mrf.mxu0
  %v212 = vadd.f32 %v44, %v211
  %v213 = vpop.f32.mrf.mxu0
  %214 = vmatprep.mubr.f32.mxu0 0.0
  %215 = vmatmul.mubr.f32.gmra.mxu0 %v81
  %v216 = vpop.f32.mrf.mxu0
  %v217 = vadd.f32 %v44, %v216
  %v218 = vpop.f32.mrf.mxu0
  %219 = vmatprep.mubr.f32.mxu0 0.0
  %220 = vmatmul.mubr.f32.gmra.mxu0 %v84
  %v221 = vpop.f32.mrf.mxu0
  %v222 = vadd.f32 %v44, %v221
  %v223 = vpop.f32.mrf.mxu0
  %224 = vmatprep.mubr.f32.mxu0 0.0
  %225 = vmatmul.mubr.f32.gmra.mxu0 %v87
  %v226 = vpop.f32.mrf.mxu0
  %v227 = vadd.f32 %v44, %v226
  %v228 = vpop.f32.mrf.mxu0
  %229 = vmatprep.mubr.f32.mxu0 0.0
  %230 = vmatmul.mubr.f32.gmra.mxu0 %v90
  %v231 = vpop.f32.mrf.mxu0
  %v232 = vadd.f32 %v44, %v231
  %v233 = vpop.f32.mrf.mxu0
  %234 = vmatprep.mubr.f32.mxu0 0.0
  %235 = vmatmul.mubr.f32.gmra.mxu0 %v93
  %v236 = vpop.f32.mrf.mxu0
  %v237 = vadd.f32 %v44, %v236
  %v238 = vpop.f32.mrf.mxu0
  %239 = vdwg.mxu0
  %v240 = vmax.f32 %v162, 0.0
  %v241 = vmax.f32 %v167, 0.0
  %v242 = vmax.f32 %v172, 0.0
  %v243 = vmax.f32 %v177, 0.0
  %v244 = vmax.f32 %v182, 0.0
  %v245 = vmax.f32 %v187, 0.0
  %v246 = vmax.f32 %v192, 0.0
  %v247 = vmax.f32 %v197, 0.0
  %v248 = vmax.f32 %v202, 0.0
  %v249 = vmax.f32 %v207, 0.0
  %v250 = vmax.f32 %v212, 0.0
  %v251 = vmax.f32 %v217, 0.0
  %v252 = vmax.f32 %v222, 0.0
  %v253 = vmax.f32 %v227, 0.0
  %v254 = vmax.f32 %v232, 0.0
  %v255 = vmax.f32 %v237, 0.0
  %v256 = vld [vmem:[%s3] sm:$0x7]
  %vm257 = vcmask 89088
  %v259 = vsel %vm257, %v256, 0
  %v262 = vsel %vm257, %v240, 0
  %v265 = vsel %vm257, %v241, 0
  %v268 = vsel %vm257, %v242, 0
  %v271 = vsel %vm257, %v243, 0
  %v274 = vsel %vm257, %v244, 0
  %v277 = vsel %vm257, %v245, 0
  %v280 = vsel %vm257, %v246, 0
  %v283 = vsel %vm257, %v247, 0
  %v286 = vsel %vm257, %v248, 0
  %v289 = vsel %vm257, %v249, 0
  %v292 = vsel %vm257, %v250, 0
  %v295 = vsel %vm257, %v251, 0
  %v298 = vsel %vm257, %v252, 0
  %v301 = vsel %vm257, %v253, 0
  %v304 = vsel %vm257, %v254, 0
  %v307 = vsel %vm257, %v255, 0
  %309 = vmatprep.subr.mxu0 0.0
  %310 = vmatpush1.xpose.msra.mxu0 %v307
  %311 = vmatprep.subr.mxu0 0.0
  %312 = vmatpush1.xpose.msra.mxu0 %v304
  %313 = vmatprep.subr.mxu0 0.0
  %314 = vmatpush1.xpose.msra.mxu0 %v301
  %315 = vmatprep.subr.mxu0 0.0
  %316 = vmatpush1.xpose.msra.mxu0 %v298
  %317 = vmatprep.subr.mxu0 0.0
  %318 = vmatpush1.xpose.msra.mxu0 %v295
  %319 = vmatprep.subr.mxu0 0.0
  %320 = vmatpush1.xpose.msra.mxu0 %v292
  %321 = vmatprep.subr.mxu0 0.0
  %322 = vmatpush1.xpose.msra.mxu0 %v289
  %323 = vmatprep.subr.mxu0 0.0
  %324 = vmatpush1.xpose.msra.mxu0 %v286
  %325 = vmatprep.subr.mxu0 0.0
  %326 = vmatpush1.xpose.msra.mxu0 %v283
  %327 = vmatprep.subr.mxu0 0.0
  %328 = vmatpush1.xpose.msra.mxu0 %v280
  %329 = vmatprep.subr.mxu0 0.0
  %330 = vmatpush1.xpose.msra.mxu0 %v277
  %331 = vmatprep.subr.mxu0 0.0
  %332 = vmatpush1.xpose.msra.mxu0 %v274
  %333 = vmatprep.subr.mxu0 0.0
  %334 = vmatpush1.xpose.msra.mxu0 %v271
  %335 = vmatprep.subr.mxu0 0.0
  %336 = vmatpush1.xpose.msra.mxu0 %v268
  %337 = vmatprep.subr.mxu0 0.0
  %338 = vmatpush1.xpose.msra.mxu0 %v265
  %339 = vmatprep.subr.mxu0 0.0
  %340 = vmatpush1.xpose.msra.mxu0 %v262
  %341 = vmatprep.subr.mxu0 0.0
  %342 = vmatpush2.xpose.msra.mxu0 0.0
  %343 = vmatprep.subr.mxu0 0.0
  %344 = vmatpush2.xpose.msra.mxu0 0.0
  %345 = vmatprep.subr.mxu0 0.0
  %346 = vmatpush2.xpose.msra.mxu0 0.0
  %347 = vmatprep.subr.mxu0 0.0
  %348 = vmatpush2.xpose.msra.mxu0 0.0
  %349 = vmatprep.subr.mxu0 0.0
  %350 = vmatpush2.xpose.msra.mxu0 0.0
  %351 = vmatprep.subr.mxu0 0.0
  %352 = vmatpush2.xpose.msra.mxu0 0.0
  %353 = vmatprep.subr.mxu0 0.0
  %354 = vmatpush2.xpose.msra.mxu0 0.0
  %355 = vmatprep.subr.mxu0 0.0
  %356 = vmatpush2.xpose.msra.mxu0 0.0
  %357 = vmatprep.subr.mxu0 0.0
  %358 = vmatpush2.xpose.msra.mxu0 0.0
  %359 = vmatprep.subr.mxu0 0.0
  %360 = vmatpush2.xpose.msra.mxu0 0.0
  %361 = vmatprep.subr.mxu0 0.0
  %362 = vmatpush2.xpose.msra.mxu0 0.0
  %363 = vmatprep.subr.mxu0 0.0
  %364 = vmatpush2.xpose.msra.mxu0 0.0
  %365 = vmatprep.subr.mxu0 0.0
  %366 = vmatpush2.xpose.msra.mxu0 0.0
  %367 = vmatprep.subr.mxu0 0.0
  %368 = vmatpush2.xpose.msra.mxu0 0.0
  %369 = vmatprep.subr.mxu0 0.0
  %370 = vmatpush2.xpose.msra.mxu0 0.0
  %371 = vmatprep.subr.mxu0 0.0
  %372 = vmatpush2.xpose.msra.mxu0 0.0
  %373 = vmatprep.mubr.f32.mxu0 0.0
  %374 = vmatmul.mubr.f32.gmra.mxu0 %v259
  %v375 = vpop.f32.mrf.mxu0
  %v376 = vadd.f32 0.0, %v375
  %v377 = vpop.f32.mrf.mxu0
  %378 = vdwg.mxu0
  %v379 = vlaneseq
  %v380 = vshrl.u32 %v379, 7
  %vm381 = vcmp.lt.s32.totalorder %v380, 2
  %v382 = vmax.f32 %v376, 0.0
  %v383 = vand.u32 2147483647, %v376
  %v384 = vsub.f32 0.0, %v383
  %v385 = vmul.f32 %v384, 1.442695
  %v386 = vpow.pop %v385
  %v387 = vadd.f32 %v386, 1.0
  %v388 = vlog2.pop %v387
  %v389 = vmul.f32 %v388, 0.6931472
  %v390 = vmul.f32 -0.5, %v386
  %v391 = vadd.f32 %v390, 1.0
  %v392 = vmul.f32 %v391, %v386
  %v393 = vand.u32 2147483647, %v386
  %vm394 = vcmp.lt.f32.partialorder %v393, 0.0004427343
  %v395 = vsel %vm394, %v392, %v389
  %v396 = vadd.f32 %v382, %v395
  %v397 = vxor.u32 %v376, 2147483648
  %v398 = vmul.f32 %v397, 1.442695
  %v399 = vpow.pop %v398
  %v400 = vadd.f32 %v399, 1.0
  %v401 = vrcp.pop %v400
  %v402 = vmul.f32 1.0, %v401
  %v403 = vsel %vm381, %v396, %v402
  %404 = vst [vmem:[%s4] sm:$0x7] %v403
  // Predicated region
  $region18: #{actor_forward.1} parent=0 // pred_check
    _
  $region19: #{actor_forward.1} parent=0 // pred_check_branch
    %406 = sbr.rel (0) target = $region21
  $region20: #{actor_forward.1} parent=0 // pred_region
    _
  $region21: #{actor_forward.1} parent=0 // pred_fallthru
    _
  // Predicated region
  $region22: #{actor_forward.1} parent=0 // pred_check
    _
  $region23: #{actor_forward.1} parent=0 // pred_check_branch
    %408 = sbr.rel (0) target = $region25
  $region24: #{actor_forward.1} parent=0 // pred_region
    _
  $region25: #{actor_forward.1} parent=0 // pred_fallthru
    _

</llo_original>
